<compile_context>
chip_gen: v5e
topology: v5e:2x2
jax: 0.10.0
libtpu: 0.0.40
codegen_flags: <defaults>
</compile_context>

<pallas_src>
import functools

import jax
import jax.numpy as jnp
from jax.experimental import pallas as pl
from jax.experimental.pallas import tpu as pltpu

_LANE = 128
_SUBLANE = 8


def _round_up(n, m):
    return ((n + m - 1) // m) * m


def _pad2d(a, rows, cols):
    """Zero-pad a 2-D array up to (rows, cols). Exact under the padding scheme."""
    r, c = a.shape
    if r == rows and c == cols:
        return a
    return jnp.zeros((rows, cols), a.dtype).at[:r, :c].set(a)


def _vmem_spec():
    # Tiny problem sizes -> whole (tile-aligned) arrays live in VMEM; no grid.
    return pl.BlockSpec(memory_space=pltpu.MemorySpace.VMEM)


# ----------------------------- fused Pallas kernel ----------------------------

def _fused_lpgnn_kernel(*refs, layers, matmul_dtype):
    """Entire LPGNN forward (all StateTransition layers + readout MLP).

    Ref order (inputs):
      labels, agg, S_src, S_tgt,
      states_0..states_{L-1},
      per layer l: W1_state, W1_lab_src, W1_lab_tgt, b1, W2, b2,
      OW1, ob1, OW2, ob2
    Ref order (outputs):
      new_state_0..new_state_{L-1}, output
    All refs are zero-padded to (8, 128)-aligned shapes by the wrapper.
    """

    def mm(a, b):
        # bf16 (or f32) operands, f32 accumulation on the MXU.
        return jnp.dot(a.astype(matmul_dtype), b.astype(matmul_dtype),
                       preferred_element_type=jnp.float32)

    it = iter(refs)
    labels_ref = next(it)
    agg_ref = next(it)
    ssrc_ref = next(it)
    stgt_ref = next(it)
    state_refs = [next(it) for _ in range(layers)]
    layer_w = [[next(it) for _ in range(6)] for _ in range(layers)]
    ow1_ref, ob1_ref, ow2_ref, ob2_ref = (next(it) for _ in range(4))
    out_state_refs = [next(it) for _ in range(layers)]
    out_ref = next(it)

    agg = agg_ref[...]                                   # [N8, E8]
    agg_rowsum = jnp.sum(agg, axis=1, keepdims=True)     # [N8, 1] (XLU reduce)
    ssrc = ssrc_ref[...]                                 # [E8, N8] one-hot edges[:,0]
    stgt = stgt_ref[...]                                 # [E8, N8] one-hot edges[:,1]

    lab = labels_ref[...]                                # layer-0 "labels"
    for l in range(layers):
        w1s_ref, w1ls_ref, w1lt_ref, b1_ref, w2_ref, b2_ref = layer_w[l]
        states = state_refs[l][...]

        # Per-node projections, then gather-by-one-hot-matmul: x_edge never built.
        p_tgt = mm(states, w1s_ref[...]) + mm(lab, w1lt_ref[...])          # [N8, Hp]
        p_src = mm(lab, w1ls_ref[...])                                     # [N8, Hp]
        h_edge = jnp.tanh(mm(stgt, p_tgt) + mm(ssrc, p_src) + b1_ref[...])  # [E8, Hp]

        # Reassociated aggregation:
        #   agg @ (h @ W2 + b2) == (agg @ h) @ W2 + rowsum(agg) * b2   (exact)
        agg_h = mm(agg, h_edge)                                            # [N8, Hp]
        new_state = mm(agg_h, w2_ref[...]) + agg_rowsum * b2_ref[...]      # [N8, SDp]

        out_state_refs[l][...] = new_state               # lane-dense, unmasked vst
        lab = new_state                                  # next layer's "labels"

    # Readout MLP (lane-dense padded output columns).
    h = jnp.tanh(mm(lab, ow1_ref[...]) + ob1_ref[...])
    out_ref[...] = mm(h, ow2_ref[...]) + ob2_ref[...]


# ------------------------------ parameter setup -------------------------------

def _linear_init(key, fan_in, fan_out):
    # deterministic, PyTorch-Linear-like uniform(-1/sqrt(fan_in), 1/sqrt(fan_in))
    kw, kb = jax.random.split(key)
    bound = 1.0 / jnp.sqrt(jnp.float32(fan_in))
    w = jax.random.uniform(kw, (fan_in, fan_out), jnp.float32, -bound, bound)
    b = jax.random.uniform(kb, (1, fan_out), jnp.float32, -bound, bound)
    return w, b


def init_lpgnn_params(key, *, n_nodes, label_dim, state_dims,
                      state_hidden, out_hidden, output_dim):
    layers = len(state_dims)
    params = {"state_mlps": [], "state_vars": [], "lambdas": [], "out_mlp": None}
    for l in range(layers):
        if l == 0:
            input_dim = state_dims[0] + 2 * label_dim
        else:
            input_dim = state_dims[l] + 2 * state_dims[l - 1]
        key, k1, k2 = jax.random.split(key, 3)
        w1, b1 = _linear_init(k1, input_dim, state_hidden)
        w2, b2 = _linear_init(k2, state_hidden, state_dims[l])
        params["state_mlps"].append((w1, b1, w2, b2))
        # nn.Parameter(torch.zeros(...)) in the PyTorch module:
        params["state_vars"].append(jnp.zeros((n_nodes, state_dims[l]), jnp.float32))
        params["lambdas"].append(jnp.zeros((n_nodes, 1), jnp.float32))  # unused in fwd
    key, k1, k2 = jax.random.split(key, 3)
    w1, b1 = _linear_init(k1, state_dims[-1], out_hidden)
    w2, b2 = _linear_init(k2, out_hidden, output_dim)
    params["out_mlp"] = (w1, b1, w2, b2)
    return params


# -------------------------------- LPGNN forward --------------------------------

def lpgnn_forward(params, edges, agg_matrix, node_labels, node_states=None,
                  matmul_dtype=jnp.bfloat16):
    """Mirrors LPGNN.forward: returns (new_state_list, output).

    The whole forward is one fused pallas_call; the wrapper only builds the
    one-hot selectors, splits W1 into row blocks, and zero-pads everything to
    (8, 128)-aligned shapes (pure glue, traced once per graph under jit).
    """
    layers = len(params["state_mlps"])
    n_nodes, n_edges = agg_matrix.shape
    label_dim = node_labels.shape[1]
    state_dims = [w2.shape[1] for (_, _, w2, _) in params["state_mlps"]]
    output_dim = params["out_mlp"][2].shape[1]

    if node_states is None:
        node_states = params["state_vars"][0]

    # Tile-aligned padded sizes.
    n8 = _round_up(n_nodes, _SUBLANE)
    e8 = _round_up(n_edges, _SUBLANE)
    ld_p = _round_up(label_dim, _LANE)
    sd_p = [_round_up(d, _LANE) for d in state_dims]
    od_p = _round_up(output_dim, _LANE)

    # Gather-as-matmul selectors: S_src[e, n] = 1 iff edges[e,0]==n (likewise tgt).
    s_src = jax.nn.one_hot(edges[:, 0], n_nodes, dtype=jnp.float32)   # [E, N]
    s_tgt = jax.nn.one_hot(edges[:, 1], n_nodes, dtype=jnp.float32)   # [E, N]

    inputs = [
        _pad2d(node_labels.astype(jnp.float32), n8, ld_p),
        _pad2d(agg_matrix.astype(jnp.float32), n8, e8),
        _pad2d(s_src, e8, n8),
        _pad2d(s_tgt, e8, n8),
    ]

    # Per-layer "states" operand: layer 0 uses node_states (defaults to
    # state_variable_list[0]); layers l>0 use state_variable_list[l].
    inputs.append(_pad2d(node_states.astype(jnp.float32), n8, sd_p[0]))
    for l in range(1, layers):
        inputs.append(_pad2d(params["state_vars"][l].astype(jnp.float32), n8, sd_p[l]))

    # Split each W1 into row blocks [tgt_state | src_label | tgt_label] and
    # zero-pad all weights/biases to lane-dense shapes (padding is exact).
    prev, prev_p = label_dim, ld_p
    for l in range(layers):
        w1, b1, w2, b2 = params["state_mlps"][l]
        sd = state_dims[l]
        hid = w1.shape[1]
        hid_p = _round_up(hid, _LANE)
        inputs += [
            _pad2d(w1[:sd], sd_p[l], hid_p),                 # W1_state
            _pad2d(w1[sd:sd + prev], prev_p, hid_p),         # W1_lab_src
            _pad2d(w1[sd + prev:], prev_p, hid_p),           # W1_lab_tgt
            _pad2d(b1, 1, hid_p),
            _pad2d(w2, hid_p, sd_p[l]),
            _pad2d(b2, 1, sd_p[l]),
        ]
        prev, prev_p = sd, sd_p[l]

    ow1, ob1, ow2, ob2 = params["out_mlp"]
    oh_p = _round_up(ow1.shape[1], _LANE)
    inputs += [
        _pad2d(ow1, sd_p[-1], oh_p),
        _pad2d(ob1, 1, oh_p),
        _pad2d(ow2, oh_p, od_p),
        _pad2d(ob2, 1, od_p),
    ]

    out_shapes = tuple(
        [jax.ShapeDtypeStruct((n8, sd_p[l]), jnp.float32) for l in range(layers)]
        + [jax.ShapeDtypeStruct((n8, od_p), jnp.float32)]
    )

    kernel = functools.partial(_fused_lpgnn_kernel, layers=layers,
                               matmul_dtype=matmul_dtype)

    # TODO(synk): at scale, tile the edge axis with a grid + BlockSpec (budget
    # against 64 MiB VMEM on v7x), mark the node/edge axis "parallel" for the
    # two v7x TensorCores, and replace the dense agg matmul with a segmented sum.
    results = pl.pallas_call(
        kernel,
        out_shape=out_shapes,
        in_specs=[_vmem_spec()] * len(inputs),
        out_specs=tuple(_vmem_spec() for _ in out_shapes),
    )(*inputs)

    new_state_list = [results[l][:n_nodes, :state_dims[l]] for l in range(layers)]
    output = results[layers][:n_nodes, :output_dim]
    # TODO(synk): lagrangian_composition / λ parameters are training-time only
    # (not part of forward); λ params are allocated but unused here, as in PyTorch.
    return new_state_list, output


# --------------------------- pure-JAX reference (spec) --------------------------

def _lpgnn_reference(params, edges, agg_matrix, node_labels, node_states=None):
    layers = len(params["state_mlps"])
    if node_states is None:
        node_states = params["state_vars"][0]
    lab = node_labels
    new_state_list = []
    for l in range(layers):
        w1, b1, w2, b2 = params["state_mlps"][l]
        states = node_states if l == 0 else params["state_vars"][l]
        x_edge = jnp.concatenate(
            [states[edges[:, 1]], lab[edges[:, 0]], lab[edges[:, 1]]], axis=-1)
        h = jnp.tanh(x_edge @ w1 + b1)
        new_state = agg_matrix @ (h @ w2 + b2)
        new_state_list.append(new_state)
        lab = new_state
    ow1, ob1, ow2, ob2 = params["out_mlp"]
    out = jnp.tanh(lab @ ow1 + ob1) @ ow2 + ob2
    return new_state_list, out


# ------------------------------------ main -------------------------------------

if __name__ == "__main__":
    # small config consistent with the module
    n_nodes = 16
    n_edges = 48
    label_dim = 8
    state_dims = [32, 32]          # config.state_dim per layer (layers=2)
    state_hidden = 32              # config.state_transition_hidden_dims
    out_hidden = 32                # config.output_function_hidden_dims
    output_dim = 4                 # config.output_dim

    key = jax.random.PRNGKey(0)
    k_param, k_lab, k_edge = jax.random.split(key, 3)

    params = init_lpgnn_params(
        k_param,
        n_nodes=n_nodes, label_dim=label_dim, state_dims=state_dims,
        state_hidden=state_hidden, out_hidden=out_hidden, output_dim=output_dim,
    )

    node_labels = jax.random.normal(k_lab, (n_nodes, label_dim), jnp.float32)
    edges = jax.random.randint(k_edge, (n_edges, 2), 0, n_nodes, jnp.int32)

    # Example aggregation matrix (an *input* to forward, as in the reference):
    # row i aggregates (degree-normalized) all edges whose source node is i.
    src_onehot = jax.nn.one_hot(edges[:, 0], n_nodes, dtype=jnp.float32).T  # [N, E]
    deg = jnp.maximum(src_onehot.sum(axis=1, keepdims=True), 1.0)
    agg_matrix = src_onehot / deg

    # Exact-parity correctness check against the pure-JAX spec (f32 matmuls).
    ref_states, ref_out = _lpgnn_reference(params, edges, agg_matrix, node_labels)
    chk_states, chk_out = lpgnn_forward(params, edges, agg_matrix, node_labels,
                                        matmul_dtype=jnp.float32)
    jax.block_until_ready(chk_out)
    for a, b in zip(chk_states + [chk_out], ref_states + [ref_out]):
        assert float(jnp.max(jnp.abs(a - b))) < 1e-4

    # Default fast path (bf16 MXU operands, f32 accumulation).
    new_state_list, output = lpgnn_forward(params, edges, agg_matrix, node_labels)
    jax.block_until_ready(output)
    for s in new_state_list:
        jax.block_until_ready(s)

    assert output.shape == (n_nodes, output_dim)
    assert all(s.shape == (n_nodes, d) for s, d in zip(new_state_list, state_dims))
    print("KERNEL_OK")
</pallas_src>

<mosaic_0001>
module attributes {stable_mosaic.version = 11 : i64} {
  func.func @_fused_lpgnn_kernel(%arg0: memref<16x128xf32, #tpu.memory_space<vmem>>, %arg1: memref<16x48xf32, #tpu.memory_space<vmem>>, %arg2: memref<48x16xf32, #tpu.memory_space<vmem>>, %arg3: memref<48x16xf32, #tpu.memory_space<vmem>>, %arg4: memref<16x128xf32, #tpu.memory_space<vmem>>, %arg5: memref<16x128xf32, #tpu.memory_space<vmem>>, %arg6: memref<128x128xf32, #tpu.memory_space<vmem>>, %arg7: memref<128x128xf32, #tpu.memory_space<vmem>>, %arg8: memref<128x128xf32, #tpu.memory_space<vmem>>, %arg9: memref<1x128xf32, #tpu.memory_space<vmem>>, %arg10: memref<128x128xf32, #tpu.memory_space<vmem>>, %arg11: memref<1x128xf32, #tpu.memory_space<vmem>>, %arg12: memref<128x128xf32, #tpu.memory_space<vmem>>, %arg13: memref<128x128xf32, #tpu.memory_space<vmem>>, %arg14: memref<128x128xf32, #tpu.memory_space<vmem>>, %arg15: memref<1x128xf32, #tpu.memory_space<vmem>>, %arg16: memref<128x128xf32, #tpu.memory_space<vmem>>, %arg17: memref<1x128xf32, #tpu.memory_space<vmem>>, %arg18: memref<128x128xf32, #tpu.memory_space<vmem>>, %arg19: memref<1x128xf32, #tpu.memory_space<vmem>>, %arg20: memref<128x128xf32, #tpu.memory_space<vmem>>, %arg21: memref<1x128xf32, #tpu.memory_space<vmem>>, %arg22: memref<16x128xf32, #tpu.memory_space<vmem>>, %arg23: memref<16x128xf32, #tpu.memory_space<vmem>>, %arg24: memref<16x128xf32, #tpu.memory_space<vmem>>) attributes {dimension_semantics = [], scalar_prefetch = 0 : i64, scratch_operands = 0 : i64, tpu.core_type = #tpu.core_type<tc>} {
    %c0 = arith.constant 0 : index
    %c0_0 = arith.constant 0 : index
    %0 = vector.load %arg1[%c0, %c0_0] : memref<16x48xf32, #tpu.memory_space<vmem>>, vector<16x48xf32>
    %cst = arith.constant dense<0.000000e+00> : vector<16xf32>
    %1 = vector.multi_reduction <add>, %0, %cst [1] : vector<16x48xf32> to vector<16xf32>
    %2 = vector.shape_cast %1 : vector<16xf32> to vector<16x1xf32>
    %c0_1 = arith.constant 0 : index
    %c0_2 = arith.constant 0 : index
    %3 = vector.load %arg2[%c0_1, %c0_2] : memref<48x16xf32, #tpu.memory_space<vmem>>, vector<48x16xf32>
    %c0_3 = arith.constant 0 : index
    %c0_4 = arith.constant 0 : index
    %4 = vector.load %arg3[%c0_3, %c0_4] : memref<48x16xf32, #tpu.memory_space<vmem>>, vector<48x16xf32>
    %c0_5 = arith.constant 0 : index
    %c0_6 = arith.constant 0 : index
    %5 = vector.load %arg0[%c0_5, %c0_6] : memref<16x128xf32, #tpu.memory_space<vmem>>, vector<16x128xf32>
    %c0_7 = arith.constant 0 : index
    %c0_8 = arith.constant 0 : index
    %6 = vector.load %arg4[%c0_7, %c0_8] : memref<16x128xf32, #tpu.memory_space<vmem>>, vector<16x128xf32>
    %c0_9 = arith.constant 0 : index
    %c0_10 = arith.constant 0 : index
    %7 = vector.load %arg6[%c0_9, %c0_10] : memref<128x128xf32, #tpu.memory_space<vmem>>, vector<128x128xf32>
    %cst_11 = arith.constant dense<0.000000e+00> : vector<16x128xf32>
    %8 = tpu.matmul %6, %7, %cst_11 {dimension_numbers = #tpu.dot_dimension_numbers<[1], [0], [0], [1], [0, 0, 1, 1], [], []>} : vector<16x128xf32>, vector<128x128xf32>, vector<16x128xf32> -> vector<16x128xf32>
    %c0_12 = arith.constant 0 : index
    %c0_13 = arith.constant 0 : index
    %9 = vector.load %arg8[%c0_12, %c0_13] : memref<128x128xf32, #tpu.memory_space<vmem>>, vector<128x128xf32>
    %cst_14 = arith.constant dense<0.000000e+00> : vector<16x128xf32>
    %10 = tpu.matmul %5, %9, %cst_14 {dimension_numbers = #tpu.dot_dimension_numbers<[1], [0], [0], [1], [0, 0, 1, 1], [], []>} : vector<16x128xf32>, vector<128x128xf32>, vector<16x128xf32> -> vector<16x128xf32>
    %11 = arith.addf %8, %10 : vector<16x128xf32>
    %c0_15 = arith.constant 0 : index
    %c0_16 = arith.constant 0 : index
    %12 = vector.load %arg7[%c0_15, %c0_16] : memref<128x128xf32, #tpu.memory_space<vmem>>, vector<128x128xf32>
    %cst_17 = arith.constant dense<0.000000e+00> : vector<16x128xf32>
    %13 = tpu.matmul %5, %12, %cst_17 {dimension_numbers = #tpu.dot_dimension_numbers<[1], [0], [0], [1], [0, 0, 1, 1], [], []>} : vector<16x128xf32>, vector<128x128xf32>, vector<16x128xf32> -> vector<16x128xf32>
    %cst_18 = arith.constant dense<0.000000e+00> : vector<48x128xf32>
    %14 = tpu.matmul %4, %11, %cst_18 {dimension_numbers = #tpu.dot_dimension_numbers<[1], [0], [0], [1], [0, 0, 1, 1], [], []>} : vector<48x16xf32>, vector<16x128xf32>, vector<48x128xf32> -> vector<48x128xf32>
    %cst_19 = arith.constant dense<0.000000e+00> : vector<48x128xf32>
    %15 = tpu.matmul %3, %13, %cst_19 {dimension_numbers = #tpu.dot_dimension_numbers<[1], [0], [0], [1], [0, 0, 1, 1], [], []>} : vector<48x16xf32>, vector<16x128xf32>, vector<48x128xf32> -> vector<48x128xf32>
    %16 = arith.addf %14, %15 : vector<48x128xf32>
    %c0_20 = arith.constant 0 : index
    %c0_21 = arith.constant 0 : index
    %17 = vector.load %arg9[%c0_20, %c0_21] : memref<1x128xf32, #tpu.memory_space<vmem>>, vector<1x128xf32>
    %18 = vector.broadcast %17 : vector<1x128xf32> to vector<48x128xf32>
    %19 = arith.addf %16, %18 : vector<48x128xf32>
    %20 = math.tanh %19 : vector<48x128xf32>
    %cst_22 = arith.constant dense<0.000000e+00> : vector<16x128xf32>
    %21 = tpu.matmul %0, %20, %cst_22 {dimension_numbers = #tpu.dot_dimension_numbers<[1], [0], [0], [1], [0, 0, 1, 1], [], []>} : vector<16x48xf32>, vector<48x128xf32>, vector<16x128xf32> -> vector<16x128xf32>
    %c0_23 = arith.constant 0 : index
    %c0_24 = arith.constant 0 : index
    %22 = vector.load %arg10[%c0_23, %c0_24] : memref<128x128xf32, #tpu.memory_space<vmem>>, vector<128x128xf32>
    %cst_25 = arith.constant dense<0.000000e+00> : vector<16x128xf32>
    %23 = tpu.matmul %21, %22, %cst_25 {dimension_numbers = #tpu.dot_dimension_numbers<[1], [0], [0], [1], [0, 0, 1, 1], [], []>} : vector<16x128xf32>, vector<128x128xf32>, vector<16x128xf32> -> vector<16x128xf32>
    %c0_26 = arith.constant 0 : index
    %c0_27 = arith.constant 0 : index
    %24 = vector.load %arg11[%c0_26, %c0_27] : memref<1x128xf32, #tpu.memory_space<vmem>>, vector<1x128xf32>
    %25 = vector.broadcast %2 : vector<16x1xf32> to vector<16x128xf32>
    %26 = vector.broadcast %24 : vector<1x128xf32> to vector<16x128xf32>
    %27 = arith.mulf %25, %26 : vector<16x128xf32>
    %28 = arith.addf %23, %27 : vector<16x128xf32>
    %c0_28 = arith.constant 0 : index
    %c0_29 = arith.constant 0 : index
    %29 = vector.load %arg22[%c0_28, %c0_29] : memref<16x128xf32, #tpu.memory_space<vmem>>, vector<16x128xf32>
    tpu.vector_store %arg22[%c0_28, %c0_29], %28 {strides = array<i32>} : memref<16x128xf32, #tpu.memory_space<vmem>>, vector<16x128xf32>,
    %c0_30 = arith.constant 0 : index
    %c0_31 = arith.constant 0 : index
    %30 = vector.load %arg5[%c0_30, %c0_31] : memref<16x128xf32, #tpu.memory_space<vmem>>, vector<16x128xf32>
    %c0_32 = arith.constant 0 : index
    %c0_33 = arith.constant 0 : index
    %31 = vector.load %arg12[%c0_32, %c0_33] : memref<128x128xf32, #tpu.memory_space<vmem>>, vector<128x128xf32>
    %cst_34 = arith.constant dense<0.000000e+00> : vector<16x128xf32>
    %32 = tpu.matmul %30, %31, %cst_34 {dimension_numbers = #tpu.dot_dimension_numbers<[1], [0], [0], [1], [0, 0, 1, 1], [], []>} : vector<16x128xf32>, vector<128x128xf32>, vector<16x128xf32> -> vector<16x128xf32>
    %c0_35 = arith.constant 0 : index
    %c0_36 = arith.constant 0 : index
    %33 = vector.load %arg14[%c0_35, %c0_36] : memref<128x128xf32, #tpu.memory_space<vmem>>, vector<128x128xf32>
    %cst_37 = arith.constant dense<0.000000e+00> : vector<16x128xf32>
    %34 = tpu.matmul %28, %33, %cst_37 {dimension_numbers = #tpu.dot_dimension_numbers<[1], [0], [0], [1], [0, 0, 1, 1], [], []>} : vector<16x128xf32>, vector<128x128xf32>, vector<16x128xf32> -> vector<16x128xf32>
    %35 = arith.addf %32, %34 : vector<16x128xf32>
    %c0_38 = arith.constant 0 : index
    %c0_39 = arith.constant 0 : index
    %36 = vector.load %arg13[%c0_38, %c0_39] : memref<128x128xf32, #tpu.memory_space<vmem>>, vector<128x128xf32>
    %cst_40 = arith.constant dense<0.000000e+00> : vector<16x128xf32>
    %37 = tpu.matmul %28, %36, %cst_40 {dimension_numbers = #tpu.dot_dimension_numbers<[1], [0], [0], [1], [0, 0, 1, 1], [], []>} : vector<16x128xf32>, vector<128x128xf32>, vector<16x128xf32> -> vector<16x128xf32>
    %cst_41 = arith.constant dense<0.000000e+00> : vector<48x128xf32>
    %38 = tpu.matmul %4, %35, %cst_41 {dimension_numbers = #tpu.dot_dimension_numbers<[1], [0], [0], [1], [0, 0, 1, 1], [], []>} : vector<48x16xf32>, vector<16x128xf32>, vector<48x128xf32> -> vector<48x128xf32>
    %cst_42 = arith.constant dense<0.000000e+00> : vector<48x128xf32>
    %39 = tpu.matmul %3, %37, %cst_42 {dimension_numbers = #tpu.dot_dimension_numbers<[1], [0], [0], [1], [0, 0, 1, 1], [], []>} : vector<48x16xf32>, vector<16x128xf32>, vector<48x128xf32> -> vector<48x128xf32>
    %40 = arith.addf %38, %39 : vector<48x128xf32>
    %c0_43 = arith.constant 0 : index
    %c0_44 = arith.constant 0 : index
    %41 = vector.load %arg15[%c0_43, %c0_44] : memref<1x128xf32, #tpu.memory_space<vmem>>, vector<1x128xf32>
    %42 = vector.broadcast %41 : vector<1x128xf32> to vector<48x128xf32>
    %43 = arith.addf %40, %42 : vector<48x128xf32>
    %44 = math.tanh %43 : vector<48x128xf32>
    %cst_45 = arith.constant dense<0.000000e+00> : vector<16x128xf32>
    %45 = tpu.matmul %0, %44, %cst_45 {dimension_numbers = #tpu.dot_dimension_numbers<[1], [0], [0], [1], [0, 0, 1, 1], [], []>} : vector<16x48xf32>, vector<48x128xf32>, vector<16x128xf32> -> vector<16x128xf32>
    %c0_46 = arith.constant 0 : index
    %c0_47 = arith.constant 0 : index
    %46 = vector.load %arg16[%c0_46, %c0_47] : memref<128x128xf32, #tpu.memory_space<vmem>>, vector<128x128xf32>
    %cst_48 = arith.constant dense<0.000000e+00> : vector<16x128xf32>
    %47 = tpu.matmul %45, %46, %cst_48 {dimension_numbers = #tpu.dot_dimension_numbers<[1], [0], [0], [1], [0, 0, 1, 1], [], []>} : vector<16x128xf32>, vector<128x128xf32>, vector<16x128xf32> -> vector<16x128xf32>
    %c0_49 = arith.constant 0 : index
    %c0_50 = arith.constant 0 : index
    %48 = vector.load %arg17[%c0_49, %c0_50] : memref<1x128xf32, #tpu.memory_space<vmem>>, vector<1x128xf32>
    %49 = vector.broadcast %2 : vector<16x1xf32> to vector<16x128xf32>
    %50 = vector.broadcast %48 : vector<1x128xf32> to vector<16x128xf32>
    %51 = arith.mulf %49, %50 : vector<16x128xf32>
    %52 = arith.addf %47, %51 : vector<16x128xf32>
    %c0_51 = arith.constant 0 : index
    %c0_52 = arith.constant 0 : index
    %53 = vector.load %arg23[%c0_51, %c0_52] : memref<16x128xf32, #tpu.memory_space<vmem>>, vector<16x128xf32>
    tpu.vector_store %arg23[%c0_51, %c0_52], %52 {strides = array<i32>} : memref<16x128xf32, #tpu.memory_space<vmem>>, vector<16x128xf32>,
    %c0_53 = arith.constant 0 : index
    %c0_54 = arith.constant 0 : index
    %54 = vector.load %arg18[%c0_53, %c0_54] : memref<128x128xf32, #tpu.memory_space<vmem>>, vector<128x128xf32>
    %cst_55 = arith.constant dense<0.000000e+00> : vector<16x128xf32>
    %55 = tpu.matmul %52, %54, %cst_55 {dimension_numbers = #tpu.dot_dimension_numbers<[1], [0], [0], [1], [0, 0, 1, 1], [], []>} : vector<16x128xf32>, vector<128x128xf32>, vector<16x128xf32> -> vector<16x128xf32>
    %c0_56 = arith.constant 0 : index
    %c0_57 = arith.constant 0 : index
    %56 = vector.load %arg19[%c0_56, %c0_57] : memref<1x128xf32, #tpu.memory_space<vmem>>, vector<1x128xf32>
    %57 = vector.broadcast %56 : vector<1x128xf32> to vector<16x128xf32>
    %58 = arith.addf %55, %57 : vector<16x128xf32>
    %59 = math.tanh %58 : vector<16x128xf32>
    %c0_58 = arith.constant 0 : index
    %c0_59 = arith.constant 0 : index
    %60 = vector.load %arg20[%c0_58, %c0_59] : memref<128x128xf32, #tpu.memory_space<vmem>>, vector<128x128xf32>
    %cst_60 = arith.constant dense<0.000000e+00> : vector<16x128xf32>
    %61 = tpu.matmul %59, %60, %cst_60 {dimension_numbers = #tpu.dot_dimension_numbers<[1], [0], [0], [1], [0, 0, 1, 1], [], []>} : vector<16x128xf32>, vector<128x128xf32>, vector<16x128xf32> -> vector<16x128xf32>
    %c0_61 = arith.constant 0 : index
    %c0_62 = arith.constant 0 : index
    %62 = vector.load %arg21[%c0_61, %c0_62] : memref<1x128xf32, #tpu.memory_space<vmem>>, vector<1x128xf32>
    %63 = vector.broadcast %62 : vector<1x128xf32> to vector<16x128xf32>
    %64 = arith.addf %61, %63 : vector<16x128xf32>
    %c0_63 = arith.constant 0 : index
    %c0_64 = arith.constant 0 : index
    %65 = vector.load %arg24[%c0_63, %c0_64] : memref<16x128xf32, #tpu.memory_space<vmem>>, vector<16x128xf32>
    tpu.vector_store %arg24[%c0_63, %c0_64], %64 {strides = array<i32>} : memref<16x128xf32, #tpu.memory_space<vmem>>, vector<16x128xf32>,
    return
  }
}

</mosaic_0001>

<llo_original>
// kernel: tpu_custom_call.1
$region0: #{tpu_custom_call.1}
  #allocation0 [shape = 'u32[]', space=smem, size = 0x4, offset = 0x4, fixed_abs, tag = 'smem constant byte address 0x4 - core index']
  #allocation1 [shape = 'u32[72,128]{1,0:T(1,128)}', space=vmem, size = 0x9000, scoped, tag = 'internal scratch']
  %s0 = inlined_call_operand.vmem [shape: f32[16,128], index: 0, kind: input, shape index: {}]
  %s1 = inlined_call_operand.vmem [shape: f32[16,48], index: 1, kind: input, shape index: {}]
  %s2 = inlined_call_operand.vmem [shape: f32[48,16], index: 2, kind: input, shape index: {}]
  %s3 = inlined_call_operand.vmem [shape: f32[48,16], index: 3, kind: input, shape index: {}]
  %s4 = inlined_call_operand.vmem [shape: f32[16,128], index: 4, kind: input, shape index: {}]
  %s5 = inlined_call_operand.vmem [shape: f32[16,128], index: 5, kind: input, shape index: {}]
  %s6 = inlined_call_operand.hbm [shape: f32[128,128], index: 6, kind: input, shape index: {}]
  %s7 = inlined_call_operand.hbm [shape: f32[128,128], index: 7, kind: input, shape index: {}]
  %s8 = inlined_call_operand.hbm [shape: f32[128,128], index: 8, kind: input, shape index: {}]
  %s9 = inlined_call_operand.vmem [shape: f32[1,128], index: 9, kind: input, shape index: {}]
  %s10 = inlined_call_operand.hbm [shape: f32[128,128], index: 10, kind: input, shape index: {}]
  %s11 = inlined_call_operand.vmem [shape: f32[1,128], index: 11, kind: input, shape index: {}]
  %s12 = inlined_call_operand.hbm [shape: f32[128,128], index: 12, kind: input, shape index: {}]
  %s13 = inlined_call_operand.hbm [shape: f32[128,128], index: 13, kind: input, shape index: {}]
  %s14 = inlined_call_operand.hbm [shape: f32[128,128], index: 14, kind: input, shape index: {}]
  %s15 = inlined_call_operand.vmem [shape: f32[1,128], index: 15, kind: input, shape index: {}]
  %s16 = inlined_call_operand.hbm [shape: f32[128,128], index: 16, kind: input, shape index: {}]
  %s17 = inlined_call_operand.vmem [shape: f32[1,128], index: 17, kind: input, shape index: {}]
  %s18 = inlined_call_operand.hbm [shape: f32[128,128], index: 18, kind: input, shape index: {}]
  %s19 = inlined_call_operand.vmem [shape: f32[1,128], index: 19, kind: input, shape index: {}]
  %s20 = inlined_call_operand.hbm [shape: f32[128,128], index: 20, kind: input, shape index: {}]
  %s21 = inlined_call_operand.vmem [shape: f32[1,128], index: 21, kind: input, shape index: {}]
  %s22 = inlined_call_operand.hbm [shape: f32[16,128], index: 22, kind: output, shape index: {0}]
  %s23 = inlined_call_operand.hbm [shape: f32[16,128], index: 23, kind: output, shape index: {1}]
  %s24 = inlined_call_operand.hbm [shape: f32[16,128], index: 24, kind: output, shape index: {2}]
  %25 = xla_tuple %s22, %s23, %s24
  %s26 = sld [smem:[#allocation0]]
  $region154: #{tpu_custom_call.1} parent=0
    _
  %s28 = ssub.s32 1, %s26
  %s29 = scalar_select 0, %s28, %s26
  $region1: #{tpu_custom_call.1} parent=0
    #allocation2 [shape = 'u8[65536]{0}', space=vmem, size = 0x10000, scoped, tag = 'input window, operand 6, single buffered']
    #allocation3 [shape = 's32[1]{0}', space=sflag, size = 0x4, scoped, tag = 'scoped memory for tpu_custom_call.1']
    #allocation4 [shape = 's32[1]{0}', space=sflag, size = 0x4, scoped, tag = 'scoped memory for tpu_custom_call.1']
    #allocation5 [shape = 'u8[65536]{0}', space=vmem, size = 0x10000, scoped, tag = 'input window, operand 7, single buffered']
    #allocation6 [shape = 's32[1]{0}', space=sflag, size = 0x4, scoped, tag = 'scoped memory for tpu_custom_call.1']
    #allocation7 [shape = 'u8[65536]{0}', space=vmem, size = 0x10000, scoped, tag = 'input window, operand 8, single buffered']
    #allocation8 [shape = 'u8[65536]{0}', space=vmem, size = 0x10000, scoped, tag = 'input window, operand 10, single buffered']
    #allocation9 [shape = 's32[1]{0}', space=sflag, size = 0x4, scoped, tag = 'scoped memory for tpu_custom_call.1']
    #allocation10 [shape = 'u8[65536]{0}', space=vmem, size = 0x10000, scoped, tag = 'input window, operand 12, single buffered']
    #allocation11 [shape = 'u8[65536]{0}', space=vmem, size = 0x10000, scoped, tag = 'input window, operand 13, single buffered']
    #allocation12 [shape = 's32[1]{0}', space=sflag, size = 0x4, scoped, tag = 'scoped memory for tpu_custom_call.1']
    #allocation13 [shape = 'u8[65536]{0}', space=vmem, size = 0x10000, scoped, tag = 'input window, operand 14, single buffered']
    #allocation14 [shape = 'u8[65536]{0}', space=vmem, size = 0x10000, scoped, tag = 'input window, operand 16, single buffered']
    #allocation15 [shape = 's32[1]{0}', space=sflag, size = 0x4, scoped, tag = 'scoped memory for tpu_custom_call.1']
    #allocation16 [shape = 'u8[65536]{0}', space=vmem, size = 0x10000, scoped, tag = 'input window, operand 18, single buffered']
    #allocation17 [shape = 'u8[65536]{0}', space=vmem, size = 0x10000, scoped, tag = 'input window, operand 20, single buffered']
    #allocation18 [shape = 's32[1]{0}', space=sflag, size = 0x4, scoped, tag = 'scoped memory for tpu_custom_call.1']
    #allocation19 [shape = 'u8[8192]{0}', space=vmem, size = 0x2000, scoped, tag = 'output window, operand 0, single buffered']
    #allocation20 [shape = 'u8[8192]{0}', space=vmem, size = 0x2000, scoped, tag = 'output window, operand 1, single buffered']
    #allocation21 [shape = 's32[1]{0}', space=sflag, size = 0x4, scoped, tag = 'scoped memory for tpu_custom_call.1']
    #allocation22 [shape = 'u8[8192]{0}', space=vmem, size = 0x2000, scoped, tag = 'output window, operand 2, single buffered']
    %30 = vsyncpa [#allocation3], 0
    %31 = vsyncpa [#allocation6], 0
    %32 = vsyncpa [#allocation9], 0
    %33 = vsyncpa [#allocation12], 0
    %34 = vsyncpa [#allocation15], 0
    %35 = vsyncpa [#allocation18], 0
    %36 = vsyncpa [#allocation4], 0
    %37 = vsyncpa [#allocation21], 0
    // Predicated region
    $region2: #{tpu_custom_call.1} parent=1 // pred_check
      _
    $region3: #{tpu_custom_call.1} parent=1 // pred_check_branch
      %39 = sbr.rel (0) target = $region5
    $region4: #{tpu_custom_call.1} parent=1 // pred_region
      _
    $region5: #{tpu_custom_call.1} parent=1 // pred_fallthru
      _
    // Predicated region
    $region6: #{tpu_custom_call.1} parent=1 // pred_check
      _
    $region7: #{tpu_custom_call.1} parent=1 // pred_check_branch
      %41 = sbr.rel (0) target = $region9
    $region8: #{tpu_custom_call.1} parent=1 // pred_region
      _
    $region9: #{tpu_custom_call.1} parent=1 // pred_fallthru
      _
    // Predicated region
    $region10: #{tpu_custom_call.1} parent=1 // pred_check
      _
    $region11: #{tpu_custom_call.1} parent=1 // pred_check_branch
      %43 = sbr.rel (0) target = $region13
    $region12: #{tpu_custom_call.1} parent=1 // pred_region
      _
    $region13: #{tpu_custom_call.1} parent=1 // pred_fallthru
      _
    // Predicated region
    $region14: #{tpu_custom_call.1} parent=1 // pred_check
      _
    $region15: #{tpu_custom_call.1} parent=1 // pred_check_branch
      %45 = sbr.rel (0) target = $region17
    $region16: #{tpu_custom_call.1} parent=1 // pred_region
      _
    $region17: #{tpu_custom_call.1} parent=1 // pred_fallthru
      _
    // Predicated region
    $region18: #{tpu_custom_call.1} parent=1 // pred_check
      _
    $region19: #{tpu_custom_call.1} parent=1 // pred_check_branch
      %47 = sbr.rel (0) target = $region21
    $region20: #{tpu_custom_call.1} parent=1 // pred_region
      _
    $region21: #{tpu_custom_call.1} parent=1 // pred_fallthru
      _
    // Predicated region
    $region22: #{tpu_custom_call.1} parent=1 // pred_check
      _
    $region23: #{tpu_custom_call.1} parent=1 // pred_check_branch
      %49 = sbr.rel (0) target = $region25
    $region24: #{tpu_custom_call.1} parent=1 // pred_region
      _
    $region25: #{tpu_custom_call.1} parent=1 // pred_fallthru
      _
    // Predicated region
    $region26: #{tpu_custom_call.1} parent=1 // pred_check
      _
    $region27: #{tpu_custom_call.1} parent=1 // pred_check_branch
      %51 = sbr.rel (0) target = $region29
    $region28: #{tpu_custom_call.1} parent=1 // pred_region
      %53 = vsyncadd [#allocation3], 0
      %s54 = sshll.u32 %s6, 4
      %s55 = int_to_ptr.hbm [resolvable:$true] %s54
      %s56 = sshll.u32 [#allocation2], 4
      %s57 = int_to_ptr.vmem [resolvable:$true] %s56
      %62 = dma.hbm_to_vmem [thread:$0]  %s55, 2048, %s57, [#allocation3], 128, 128, 8
    $region29: #{tpu_custom_call.1} parent=1 // pred_fallthru
      _
    // Predicated region
    $region30: #{tpu_custom_call.1} parent=1 // pred_check
      _
    $region31: #{tpu_custom_call.1} parent=1 // pred_check_branch
      %64 = sbr.rel (0) target = $region33
    $region32: #{tpu_custom_call.1} parent=1 // pred_region
      %66 = vsyncadd [#allocation6], 0
      %s67 = sshll.u32 %s7, 4
      %s68 = int_to_ptr.hbm [resolvable:$true] %s67
      %s69 = sshll.u32 [#allocation5], 4
      %s70 = int_to_ptr.vmem [resolvable:$true] %s69
      %75 = dma.hbm_to_vmem [thread:$0]  %s68, 2048, %s70, [#allocation6], 128, 128, 8
    $region33: #{tpu_custom_call.1} parent=1 // pred_fallthru
      _
    // Predicated region
    $region34: #{tpu_custom_call.1} parent=1 // pred_check
      _
    $region35: #{tpu_custom_call.1} parent=1 // pred_check_branch
      %77 = sbr.rel (0) target = $region37
    $region36: #{tpu_custom_call.1} parent=1 // pred_region
      %79 = vsyncadd [#allocation6], 0
      %s80 = sshll.u32 %s8, 4
      %s81 = int_to_ptr.hbm [resolvable:$true] %s80
      %s82 = sshll.u32 [#allocation7], 4
      %s83 = int_to_ptr.vmem [resolvable:$true] %s82
      %88 = dma.hbm_to_vmem [thread:$0]  %s81, 2048, %s83, [#allocation6], 128, 128, 8
    $region37: #{tpu_custom_call.1} parent=1 // pred_fallthru
      _
    // Predicated region
    $region38: #{tpu_custom_call.1} parent=1 // pred_check
      _
    $region39: #{tpu_custom_call.1} parent=1 // pred_check_branch
      %90 = sbr.rel (0) target = $region41
    $region40: #{tpu_custom_call.1} parent=1 // pred_region
      _
    $region41: #{tpu_custom_call.1} parent=1 // pred_fallthru
      _
    // Predicated region
    $region42: #{tpu_custom_call.1} parent=1 // pred_check
      _
    $region43: #{tpu_custom_call.1} parent=1 // pred_check_branch
      %92 = sbr.rel (0) target = $region45
    $region44: #{tpu_custom_call.1} parent=1 // pred_region
      %94 = vsyncadd [#allocation9], 0
      %s95 = sshll.u32 %s10, 4
      %s96 = int_to_ptr.hbm [resolvable:$true] %s95
      %s97 = sshll.u32 [#allocation8], 4
      %s98 = int_to_ptr.vmem [resolvable:$true] %s97
      %103 = dma.hbm_to_vmem [thread:$0]  %s96, 2048, %s98, [#allocation9], 128, 128, 8
    $region45: #{tpu_custom_call.1} parent=1 // pred_fallthru
      _
    // Predicated region
    $region46: #{tpu_custom_call.1} parent=1 // pred_check
      _
    $region47: #{tpu_custom_call.1} parent=1 // pred_check_branch
      %105 = sbr.rel (0) target = $region49
    $region48: #{tpu_custom_call.1} parent=1 // pred_region
      _
    $region49: #{tpu_custom_call.1} parent=1 // pred_fallthru
      _
    // Predicated region
    $region50: #{tpu_custom_call.1} parent=1 // pred_check
      _
    $region51: #{tpu_custom_call.1} parent=1 // pred_check_branch
      %107 = sbr.rel (0) target = $region53
    $region52: #{tpu_custom_call.1} parent=1 // pred_region
      %109 = vsyncadd [#allocation9], 0
      %s110 = sshll.u32 %s12, 4
      %s111 = int_to_ptr.hbm [resolvable:$true] %s110
      %s112 = sshll.u32 [#allocation10], 4
      %s113 = int_to_ptr.vmem [resolvable:$true] %s112
      %118 = dma.hbm_to_vmem [thread:$0]  %s111, 2048, %s113, [#allocation9], 128, 128, 8
    $region53: #{tpu_custom_call.1} parent=1 // pred_fallthru
      _
    // Predicated region
    $region54: #{tpu_custom_call.1} parent=1 // pred_check
      _
    $region55: #{tpu_custom_call.1} parent=1 // pred_check_branch
      %120 = sbr.rel (0) target = $region57
    $region56: #{tpu_custom_call.1} parent=1 // pred_region
      %122 = vsyncadd [#allocation12], 0
      %s123 = sshll.u32 %s13, 4
      %s124 = int_to_ptr.hbm [resolvable:$true] %s123
      %s125 = sshll.u32 [#allocation11], 4
      %s126 = int_to_ptr.vmem [resolvable:$true] %s125
      %131 = dma.hbm_to_vmem [thread:$0]  %s124, 2048, %s126, [#allocation12], 128, 128, 8
    $region57: #{tpu_custom_call.1} parent=1 // pred_fallthru
      _
    // Predicated region
    $region58: #{tpu_custom_call.1} parent=1 // pred_check
      _
    $region59: #{tpu_custom_call.1} parent=1 // pred_check_branch
      %133 = sbr.rel (0) target = $region61
    $region60: #{tpu_custom_call.1} parent=1 // pred_region
      %135 = vsyncadd [#allocation12], 0
      %s136 = sshll.u32 %s14, 4
      %s137 = int_to_ptr.hbm [resolvable:$true] %s136
      %s138 = sshll.u32 [#allocation13], 4
      %s139 = int_to_ptr.vmem [resolvable:$true] %s138
      %144 = dma.hbm_to_vmem [thread:$0]  %s137, 2048, %s139, [#allocation12], 128, 128, 8
    $region61: #{tpu_custom_call.1} parent=1 // pred_fallthru
      _
    // Predicated region
    $region62: #{tpu_custom_call.1} parent=1 // pred_check
      _
    $region63: #{tpu_custom_call.1} parent=1 // pred_check_branch
      %146 = sbr.rel (0) target = $region65
    $region64: #{tpu_custom_call.1} parent=1 // pred_region
      _
    $region65: #{tpu_custom_call.1} parent=1 // pred_fallthru
      _
    // Predicated region
    $region66: #{tpu_custom_call.1} parent=1 // pred_check
      _
    $region67: #{tpu_custom_call.1} parent=1 // pred_check_branch
      %148 = sbr.rel (0) target = $region69
    $region68: #{tpu_custom_call.1} parent=1 // pred_region
      %150 = vsyncadd [#allocation15], 0
      %s151 = sshll.u32 %s16, 4
      %s152 = int_to_ptr.hbm [resolvable:$true] %s151
      %s153 = sshll.u32 [#allocation14], 4
      %s154 = int_to_ptr.vmem [resolvable:$true] %s153
      %159 = dma.hbm_to_vmem [thread:$0]  %s152, 2048, %s154, [#allocation15], 128, 128, 8
    $region69: #{tpu_custom_call.1} parent=1 // pred_fallthru
      _
    // Predicated region
    $region70: #{tpu_custom_call.1} parent=1 // pred_check
      _
    $region71: #{tpu_custom_call.1} parent=1 // pred_check_branch
      %161 = sbr.rel (0) target = $region73
    $region72: #{tpu_custom_call.1} parent=1 // pred_region
      _
    $region73: #{tpu_custom_call.1} parent=1 // pred_fallthru
      _
    // Predicated region
    $region74: #{tpu_custom_call.1} parent=1 // pred_check
      _
    $region75: #{tpu_custom_call.1} parent=1 // pred_check_branch
      %163 = sbr.rel (0) target = $region77
    $region76: #{tpu_custom_call.1} parent=1 // pred_region
      %165 = vsyncadd [#allocation15], 0
      %s166 = sshll.u32 %s18, 4
      %s167 = int_to_ptr.hbm [resolvable:$true] %s166
      %s168 = sshll.u32 [#allocation16], 4
      %s169 = int_to_ptr.vmem [resolvable:$true] %s168
      %174 = dma.hbm_to_vmem [thread:$0]  %s167, 2048, %s169, [#allocation15], 128, 128, 8
    $region77: #{tpu_custom_call.1} parent=1 // pred_fallthru
      _
    // Predicated region
    $region78: #{tpu_custom_call.1} parent=1 // pred_check
      _
    $region79: #{tpu_custom_call.1} parent=1 // pred_check_branch
      %176 = sbr.rel (0) target = $region81
    $region80: #{tpu_custom_call.1} parent=1 // pred_region
      _
    $region81: #{tpu_custom_call.1} parent=1 // pred_fallthru
      _
    // Predicated region
    $region82: #{tpu_custom_call.1} parent=1 // pred_check
      _
    $region83: #{tpu_custom_call.1} parent=1 // pred_check_branch
      %178 = sbr.rel (0) target = $region85
    $region84: #{tpu_custom_call.1} parent=1 // pred_region
      %180 = vsyncadd [#allocation18], 0
      %s181 = sshll.u32 %s20, 4
      %s182 = int_to_ptr.hbm [resolvable:$true] %s181
      %s183 = sshll.u32 [#allocation17], 4
      %s184 = int_to_ptr.vmem [resolvable:$true] %s183
      %189 = dma.hbm_to_vmem [thread:$0]  %s182, 2048, %s184, [#allocation18], 128, 128, 8
    $region85: #{tpu_custom_call.1} parent=1 // pred_fallthru
      _
    // Predicated region
    $region86: #{tpu_custom_call.1} parent=1 // pred_check
      _
    $region87: #{tpu_custom_call.1} parent=1 // pred_check_branch
      %191 = sbr.rel (0) target = $region89
    $region88: #{tpu_custom_call.1} parent=1 // pred_region
      _
    $region89: #{tpu_custom_call.1} parent=1 // pred_fallthru
      _
    // Predicated region
    $region90: #{tpu_custom_call.1} parent=1 // pred_check
      _
    $region91: #{tpu_custom_call.1} parent=1 // pred_check_branch
      %193 = sbr.rel (0) target = $region93
    $region92: #{tpu_custom_call.1} parent=1 // pred_region
      %195 = dma.done [#allocation3], 2048
    $region93: #{tpu_custom_call.1} parent=1 // pred_fallthru
      _
    // Predicated region
    $region94: #{tpu_custom_call.1} parent=1 // pred_check
      _
    $region95: #{tpu_custom_call.1} parent=1 // pred_check_branch
      %197 = sbr.rel (0) target = $region97
    $region96: #{tpu_custom_call.1} parent=1 // pred_region
      %199 = dma.done [#allocation6], 2048
    $region97: #{tpu_custom_call.1} parent=1 // pred_fallthru
      _
    // Predicated region
    $region98: #{tpu_custom_call.1} parent=1 // pred_check
      _
    $region99: #{tpu_custom_call.1} parent=1 // pred_check_branch
      %201 = sbr.rel (0) target = $region101
    $region100: #{tpu_custom_call.1} parent=1 // pred_region
      %203 = dma.done [#allocation6], 2048
    $region101: #{tpu_custom_call.1} parent=1 // pred_fallthru
      _
    // Predicated region
    $region102: #{tpu_custom_call.1} parent=1 // pred_check
      _
    $region103: #{tpu_custom_call.1} parent=1 // pred_check_branch
      %205 = sbr.rel (0) target = $region105
    $region104: #{tpu_custom_call.1} parent=1 // pred_region
      %207 = dma.done [#allocation9], 2048
    $region105: #{tpu_custom_call.1} parent=1 // pred_fallthru
      _
    // Predicated region
    $region106: #{tpu_custom_call.1} parent=1 // pred_check
      _
    $region107: #{tpu_custom_call.1} parent=1 // pred_check_branch
      %209 = sbr.rel (0) target = $region109
    $region108: #{tpu_custom_call.1} parent=1 // pred_region
      %211 = dma.done [#allocation9], 2048
    $region109: #{tpu_custom_call.1} parent=1 // pred_fallthru
      _
    // Predicated region
    $region110: #{tpu_custom_call.1} parent=1 // pred_check
      _
    $region111: #{tpu_custom_call.1} parent=1 // pred_check_branch
      %213 = sbr.rel (0) target = $region113
    $region112: #{tpu_custom_call.1} parent=1 // pred_region
      %215 = dma.done [#allocation12], 2048
    $region113: #{tpu_custom_call.1} parent=1 // pred_fallthru
      _
    // Predicated region
    $region114: #{tpu_custom_call.1} parent=1 // pred_check
      _
    $region115: #{tpu_custom_call.1} parent=1 // pred_check_branch
      %217 = sbr.rel (0) target = $region117
    $region116: #{tpu_custom_call.1} parent=1 // pred_region
      %219 = dma.done [#allocation12], 2048
    $region117: #{tpu_custom_call.1} parent=1 // pred_fallthru
      _
    // Predicated region
    $region118: #{tpu_custom_call.1} parent=1 // pred_check
      _
    $region119: #{tpu_custom_call.1} parent=1 // pred_check_branch
      %221 = sbr.rel (0) target = $region121
    $region120: #{tpu_custom_call.1} parent=1 // pred_region
      %223 = dma.done [#allocation15], 2048
    $region121: #{tpu_custom_call.1} parent=1 // pred_fallthru
      _
    // Predicated region
    $region122: #{tpu_custom_call.1} parent=1 // pred_check
      _
    $region123: #{tpu_custom_call.1} parent=1 // pred_check_branch
      %225 = sbr.rel (0) target = $region125
    $region124: #{tpu_custom_call.1} parent=1 // pred_region
      %227 = dma.done [#allocation15], 2048
    $region125: #{tpu_custom_call.1} parent=1 // pred_fallthru
      _
    // Predicated region
    $region126: #{tpu_custom_call.1} parent=1 // pred_check
      _
    $region127: #{tpu_custom_call.1} parent=1 // pred_check_branch
      %229 = sbr.rel (0) target = $region129
    $region128: #{tpu_custom_call.1} parent=1 // pred_region
      %231 = dma.done [#allocation18], 2048
    $region129: #{tpu_custom_call.1} parent=1 // pred_fallthru
      _
    %v232 = vld [vmem:[%s1] sm:$0xff]
    %v233 = vld [vmem:[%s1 + $0x8] sm:$0xff]
    %vm234 = vcmask 392192
    %v235 = vsel %vm234, %v232, 0.0
    %236 = vadd.xlane.f32.xlu0 %v235
    %v237 = vpop.xlane.xlu0 %236
    %v238 = vsel %vm234, %v233, 0.0
    %239 = vadd.xlane.f32.xlu0 %v238
    %v240 = vpop.xlane.xlu0 %239
    %v241 = vld [vmem:[%s2] sm:$0xff]
    %v242 = vld [vmem:[%s2 + $0x8] sm:$0xff]
    %v243 = vld [vmem:[%s2 + $0x10] sm:$0xff]
    %v244 = vld [vmem:[%s2 + $0x18] sm:$0xff]
    %v245 = vld [vmem:[%s2 + $0x20] sm:$0xff]
    %v246 = vld [vmem:[%s2 + $0x28] sm:$0xff]
    %v247 = vld [vmem:[%s3] sm:$0xff]
    %v248 = vld [vmem:[%s3 + $0x8] sm:$0xff]
    %v249 = vld [vmem:[%s3 + $0x10] sm:$0xff]
    %v250 = vld [vmem:[%s3 + $0x18] sm:$0xff]
    %v251 = vld [vmem:[%s3 + $0x20] sm:$0xff]
    %v252 = vld [vmem:[%s3 + $0x28] sm:$0xff]
    %v253 = vld [vmem:[%s0] sm:$0xff]
    %v254 = vld [vmem:[%s0 + $0x8] sm:$0xff]
    %v255 = vld [vmem:[%s4] sm:$0xff]
    %v256 = vld [vmem:[%s4 + $0x8] sm:$0xff]
    %v257 = vld [vmem:[#allocation2] sm:$0xff]
    %v258 = vld [vmem:[#allocation2 + $0x8] sm:$0xff]
    %v259 = vld [vmem:[#allocation2 + $0x10] sm:$0xff]
    %v260 = vld [vmem:[#allocation2 + $0x18] sm:$0xff]
    %v261 = vld [vmem:[#allocation2 + $0x20] sm:$0xff]
    %v262 = vld [vmem:[#allocation2 + $0x28] sm:$0xff]
    %v263 = vld [vmem:[#allocation2 + $0x30] sm:$0xff]
    %v264 = vld [vmem:[#allocation2 + $0x38] sm:$0xff]
    %v265 = vld [vmem:[#allocation2 + $0x40] sm:$0xff]
    %v266 = vld [vmem:[#allocation2 + $0x48] sm:$0xff]
    %v267 = vld [vmem:[#allocation2 + $0x50] sm:$0xff]
    %v268 = vld [vmem:[#allocation2 + $0x58] sm:$0xff]
    %v269 = vld [vmem:[#allocation2 + $0x60] sm:$0xff]
    %v270 = vld [vmem:[#allocation2 + $0x68] sm:$0xff]
    %v271 = vld [vmem:[#allocation2 + $0x70] sm:$0xff]
    %v272 = vld [vmem:[#allocation2 + $0x78] sm:$0xff]
    %v273 = vld [vmem:[#allocation7] sm:$0xff]
    %v274 = vld [vmem:[#allocation7 + $0x8] sm:$0xff]
    %v275 = vld [vmem:[#allocation7 + $0x10] sm:$0xff]
    %v276 = vld [vmem:[#allocation7 + $0x18] sm:$0xff]
    %v277 = vld [vmem:[#allocation7 + $0x20] sm:$0xff]
    %v278 = vld [vmem:[#allocation7 + $0x28] sm:$0xff]
    %v279 = vld [vmem:[#allocation7 + $0x30] sm:$0xff]
    %v280 = vld [vmem:[#allocation7 + $0x38] sm:$0xff]
    %v281 = vld [vmem:[#allocation7 + $0x40] sm:$0xff]
    %v282 = vld [vmem:[#allocation7 + $0x48] sm:$0xff]
    %v283 = vld [vmem:[#allocation7 + $0x50] sm:$0xff]
    %v284 = vld [vmem:[#allocation7 + $0x58] sm:$0xff]
    %v285 = vld [vmem:[#allocation7 + $0x60] sm:$0xff]
    %v286 = vld [vmem:[#allocation7 + $0x68] sm:$0xff]
    %v287 = vld [vmem:[#allocation7 + $0x70] sm:$0xff]
    %v288 = vld [vmem:[#allocation7 + $0x78] sm:$0xff]
    %289 = vmatpush.msra.mxu0 %v288
    %290 = vmatpush.msra.mxu0 %v287
    %291 = vmatpush.msra.mxu0 %v286
    %292 = vmatpush.msra.mxu0 %v285
    %293 = vmatpush.msra.mxu0 %v284
    %294 = vmatpush.msra.mxu0 %v283
    %295 = vmatpush.msra.mxu0 %v282
    %296 = vmatpush.msra.mxu0 %v281
    %297 = vmatpush.msra.mxu0 %v280
    %298 = vmatpush.msra.mxu0 %v279
    %299 = vmatpush.msra.mxu0 %v278
    %300 = vmatpush.msra.mxu0 %v277
    %301 = vmatpush.msra.mxu0 %v276
    %302 = vmatpush.msra.mxu0 %v275
    %303 = vmatpush.msra.mxu0 %v274
    %304 = vmatpush.msra.mxu0 %v273
    %305 = vmatmul.f32.gmra.mxu0 %v253
    %v306 = vpop.f32.mrf.mxu0
    %v307 = vadd.f32 0.0, %v306
    %308 = vmatmul.f32.gmra.mxu0 %v254
    %v309 = vpop.f32.mrf.mxu0
    %v310 = vadd.f32 0.0, %v309
    %311 = vdwg.mxu0
    %312 = vmatpush.msra.mxu0 %v272
    %313 = vmatpush.msra.mxu0 %v271
    %314 = vmatpush.msra.mxu0 %v270
    %315 = vmatpush.msra.mxu0 %v269
    %316 = vmatpush.msra.mxu0 %v268
    %317 = vmatpush.msra.mxu0 %v267
    %318 = vmatpush.msra.mxu0 %v266
    %319 = vmatpush.msra.mxu0 %v265
    %320 = vmatpush.msra.mxu0 %v264
    %321 = vmatpush.msra.mxu0 %v263
    %322 = vmatpush.msra.mxu0 %v262
    %323 = vmatpush.msra.mxu0 %v261
    %324 = vmatpush.msra.mxu0 %v260
    %325 = vmatpush.msra.mxu0 %v259
    %326 = vmatpush.msra.mxu0 %v258
    %327 = vmatpush.msra.mxu0 %v257
    %328 = vmatmul.f32.gmra.mxu0 %v255
    %v329 = vpop.f32.mrf.mxu0
    %v330 = vadd.f32 %v307, %v329
    %331 = vmatmul.f32.gmra.mxu0 %v256
    %v332 = vpop.f32.mrf.mxu0
    %v333 = vadd.f32 %v310, %v332
    %334 = vdwg.mxu0
    %v335 = vld [vmem:[#allocation5] sm:$0xff]
    %v336 = vld [vmem:[#allocation5 + $0x8] sm:$0xff]
    %v337 = vld [vmem:[#allocation5 + $0x10] sm:$0xff]
    %v338 = vld [vmem:[#allocation5 + $0x18] sm:$0xff]
    %v339 = vld [vmem:[#allocation5 + $0x20] sm:$0xff]
    %v340 = vld [vmem:[#allocation5 + $0x28] sm:$0xff]
    %v341 = vld [vmem:[#allocation5 + $0x30] sm:$0xff]
    %v342 = vld [vmem:[#allocation5 + $0x38] sm:$0xff]
    %v343 = vld [vmem:[#allocation5 + $0x40] sm:$0xff]
    %v344 = vld [vmem:[#allocation5 + $0x48] sm:$0xff]
    %v345 = vld [vmem:[#allocation5 + $0x50] sm:$0xff]
    %v346 = vld [vmem:[#allocation5 + $0x58] sm:$0xff]
    %v347 = vld [vmem:[#allocation5 + $0x60] sm:$0xff]
    %v348 = vld [vmem:[#allocation5 + $0x68] sm:$0xff]
    %v349 = vld [vmem:[#allocation5 + $0x70] sm:$0xff]
    %v350 = vld [vmem:[#allocation5 + $0x78] sm:$0xff]
    %351 = vmatpush.msra.mxu0 %v350
    %352 = vmatpush.msra.mxu0 %v349
    %353 = vmatpush.msra.mxu0 %v348
    %354 = vmatpush.msra.mxu0 %v347
    %355 = vmatpush.msra.mxu0 %v346
    %356 = vmatpush.msra.mxu0 %v345
    %357 = vmatpush.msra.mxu0 %v344
    %358 = vmatpush.msra.mxu0 %v343
    %359 = vmatpush.msra.mxu0 %v342
    %360 = vmatpush.msra.mxu0 %v341
    %361 = vmatpush.msra.mxu0 %v340
    %362 = vmatpush.msra.mxu0 %v339
    %363 = vmatpush.msra.mxu0 %v338
    %364 = vmatpush.msra.mxu0 %v337
    %365 = vmatpush.msra.mxu0 %v336
    %366 = vmatpush.msra.mxu0 %v335
    %367 = vmatmul.f32.gmra.mxu0 %v253
    %v368 = vpop.f32.mrf.mxu0
    %v369 = vadd.f32 0.0, %v368
    %370 = vmatmul.f32.gmra.mxu0 %v254
    %v371 = vpop.f32.mrf.mxu0
    %v372 = vadd.f32 0.0, %v371
    %373 = vdwg.mxu0
    %vm374 = vcmask 130048
    %v376 = vsel %vm374, %v241, 0
    %v379 = vsel %vm374, %v242, 0
    %v382 = vsel %vm374, %v243, 0
    %v385 = vsel %vm374, %v244, 0
    %v388 = vsel %vm374, %v245, 0
    %v391 = vsel %vm374, %v246, 0
    %393 = vmatpush.msra.mxu0 0.0
    %394 = vmatpush.msra.mxu0 0.0
    %395 = vmatpush.msra.mxu0 0.0
    %396 = vmatpush.msra.mxu0 0.0
    %397 = vmatpush.msra.mxu0 0.0
    %398 = vmatpush.msra.mxu0 0.0
    %399 = vmatpush.msra.mxu0 0.0
    %400 = vmatpush.msra.mxu0 0.0
    %401 = vmatpush.msra.mxu0 0.0
    %402 = vmatpush.msra.mxu0 0.0
    %403 = vmatpush.msra.mxu0 0.0
    %404 = vmatpush.msra.mxu0 0.0
    %405 = vmatpush.msra.mxu0 0.0
    %406 = vmatpush.msra.mxu0 0.0
    %407 = vmatpush.msra.mxu0 %v372
    %408 = vmatpush.msra.mxu0 %v369
    %409 = vmatmul.f32.gmra.mxu0 %v376
    %v410 = vpop.f32.mrf.mxu0
    %v411 = vadd.f32 0.0, %v410
    %412 = vmatmul.f32.gmra.mxu0 %v379
    %v413 = vpop.f32.mrf.mxu0
    %v414 = vadd.f32 0.0, %v413
    %415 = vmatmul.f32.gmra.mxu0 %v382
    %v416 = vpop.f32.mrf.mxu0
    %v417 = vadd.f32 0.0, %v416
    %418 = vmatmul.f32.gmra.mxu0 %v385
    %v419 = vpop.f32.mrf.mxu0
    %v420 = vadd.f32 0.0, %v419
    %421 = vmatmul.f32.gmra.mxu0 %v388
    %v422 = vpop.f32.mrf.mxu0
    %v423 = vadd.f32 0.0, %v422
    %424 = vmatmul.f32.gmra.mxu0 %v391
    %v425 = vpop.f32.mrf.mxu0
    %v426 = vadd.f32 0.0, %v425
    %427 = vdwg.mxu0
    %v429 = vsel %vm374, %v247, 0
    %v432 = vsel %vm374, %v248, 0
    %v435 = vsel %vm374, %v249, 0
    %v438 = vsel %vm374, %v250, 0
    %v441 = vsel %vm374, %v251, 0
    %v444 = vsel %vm374, %v252, 0
    %446 = vmatpush.msra.mxu0 0.0
    %447 = vmatpush.msra.mxu0 0.0
    %448 = vmatpush.msra.mxu0 0.0
    %449 = vmatpush.msra.mxu0 0.0
    %450 = vmatpush.msra.mxu0 0.0
    %451 = vmatpush.msra.mxu0 0.0
    %452 = vmatpush.msra.mxu0 0.0
    %453 = vmatpush.msra.mxu0 0.0
    %454 = vmatpush.msra.mxu0 0.0
    %455 = vmatpush.msra.mxu0 0.0
    %456 = vmatpush.msra.mxu0 0.0
    %457 = vmatpush.msra.mxu0 0.0
    %458 = vmatpush.msra.mxu0 0.0
    %459 = vmatpush.msra.mxu0 0.0
    %460 = vmatpush.msra.mxu0 %v333
    %461 = vmatpush.msra.mxu0 %v330
    %462 = vmatmul.f32.gmra.mxu0 %v429
    %v463 = vpop.f32.mrf.mxu0
    %v464 = vadd.f32 %v411, %v463
    %465 = vmatmul.f32.gmra.mxu0 %v432
    %v466 = vpop.f32.mrf.mxu0
    %v467 = vadd.f32 %v414, %v466
    %468 = vmatmul.f32.gmra.mxu0 %v435
    %v469 = vpop.f32.mrf.mxu0
    %v470 = vadd.f32 %v417, %v469
    %471 = vmatmul.f32.gmra.mxu0 %v438
    %v472 = vpop.f32.mrf.mxu0
    %v473 = vadd.f32 %v420, %v472
    %474 = vmatmul.f32.gmra.mxu0 %v441
    %v475 = vpop.f32.mrf.mxu0
    %v476 = vadd.f32 %v423, %v475
    %477 = vmatmul.f32.gmra.mxu0 %v444
    %v478 = vpop.f32.mrf.mxu0
    %v479 = vadd.f32 %v426, %v478
    %480 = vdwg.mxu0
    %v481 = vld [vmem:[%s9] sm:$0x1]
    %v483 = vperm.slane %v481, 0
    %v485 = vadd.f32 %v464, %v483
    %v486 = vadd.f32 %v467, %v483
    %v487 = vadd.f32 %v470, %v483
    %v488 = vadd.f32 %v473, %v483
    %v489 = vadd.f32 %v476, %v483
    %v490 = vadd.f32 %v479, %v483
    %v491 = vtanh.pop %v485
    %v492 = vtanh.pop %v486
    %v493 = vtanh.pop %v487
    %v494 = vtanh.pop %v488
    %v495 = vtanh.pop %v489
    %v496 = vtanh.pop %v490
    %v498 = vsel %vm234, %v232, 0
    %v501 = vsel %vm234, %v233, 0
    %503 = vmatpush.msra.mxu0 0.0
    %504 = vmatpush.msra.mxu0 0.0
    %505 = vmatpush.msra.mxu0 0.0
    %506 = vmatpush.msra.mxu0 0.0
    %507 = vmatpush.msra.mxu0 0.0
    %508 = vmatpush.msra.mxu0 0.0
    %509 = vmatpush.msra.mxu0 0.0
    %510 = vmatpush.msra.mxu0 0.0
    %511 = vmatpush.msra.mxu0 0.0
    %512 = vmatpush.msra.mxu0 0.0
    %513 = vmatpush.msra.mxu0 %v496
    %514 = vmatpush.msra.mxu0 %v495
    %515 = vmatpush.msra.mxu0 %v494
    %516 = vmatpush.msra.mxu0 %v493
    %517 = vmatpush.msra.mxu0 %v492
    %518 = vmatpush.msra.mxu0 %v491
    %519 = vmatmul.f32.gmra.mxu0 %v498
    %v520 = vpop.f32.mrf.mxu0
    %v521 = vadd.f32 0.0, %v520
    %522 = vmatmul.f32.gmra.mxu0 %v501
    %v523 = vpop.f32.mrf.mxu0
    %v524 = vadd.f32 0.0, %v523
    %525 = vdwg.mxu0
    %v526 = vld [vmem:[#allocation8] sm:$0xff]
    %v527 = vld [vmem:[#allocation8 + $0x8] sm:$0xff]
    %v528 = vld [vmem:[#allocation8 + $0x10] sm:$0xff]
    %v529 = vld [vmem:[#allocation8 + $0x18] sm:$0xff]
    %v530 = vld [vmem:[#allocation8 + $0x20] sm:$0xff]
    %v531 = vld [vmem:[#allocation8 + $0x28] sm:$0xff]
    %v532 = vld [vmem:[#allocation8 + $0x30] sm:$0xff]
    %v533 = vld [vmem:[#allocation8 + $0x38] sm:$0xff]
    %v534 = vld [vmem:[#allocation8 + $0x40] sm:$0xff]
    %v535 = vld [vmem:[#allocation8 + $0x48] sm:$0xff]
    %v536 = vld [vmem:[#allocation8 + $0x50] sm:$0xff]
    %v537 = vld [vmem:[#allocation8 + $0x58] sm:$0xff]
    %v538 = vld [vmem:[#allocation8 + $0x60] sm:$0xff]
    %v539 = vld [vmem:[#allocation8 + $0x68] sm:$0xff]
    %v540 = vld [vmem:[#allocation8 + $0x70] sm:$0xff]
    %v541 = vld [vmem:[#allocation8 + $0x78] sm:$0xff]
    %v542 = vld [vmem:[%s11] sm:$0x1]
    %v544 = vperm.slane %v542, 0
    %v546 = vmul.f32 %v237, %v544
    %v547 = vmul.f32 %v240, %v544
    %548 = vmatpush.msra.mxu0 %v541
    %549 = vmatpush.msra.mxu0 %v540
    %550 = vmatpush.msra.mxu0 %v539
    %551 = vmatpush.msra.mxu0 %v538
    %552 = vmatpush.msra.mxu0 %v537
    %553 = vmatpush.msra.mxu0 %v536
    %554 = vmatpush.msra.mxu0 %v535
    %555 = vmatpush.msra.mxu0 %v534
    %556 = vmatpush.msra.mxu0 %v533
    %557 = vmatpush.msra.mxu0 %v532
    %558 = vmatpush.msra.mxu0 %v531
    %559 = vmatpush.msra.mxu0 %v530
    %560 = vmatpush.msra.mxu0 %v529
    %561 = vmatpush.msra.mxu0 %v528
    %562 = vmatpush.msra.mxu0 %v527
    %563 = vmatpush.msra.mxu0 %v526
    %564 = vmatmul.f32.gmra.mxu0 %v521
    %v565 = vpop.f32.mrf.mxu0
    %v566 = vadd.f32 %v546, %v565
    %567 = vmatmul.f32.gmra.mxu0 %v524
    %v568 = vpop.f32.mrf.mxu0
    %v569 = vadd.f32 %v547, %v568
    %570 = vdwg.mxu0
    %571 = vst [vmem:[#allocation19] sm:$0xff] %v566
    %572 = vst [vmem:[#allocation19 + $0x8] sm:$0xff] %v569
    %v573 = vld [vmem:[%s5] sm:$0xff]
    %v574 = vld [vmem:[%s5 + $0x8] sm:$0xff]
    %v575 = vld [vmem:[#allocation10] sm:$0xff]
    %v576 = vld [vmem:[#allocation10 + $0x8] sm:$0xff]
    %v577 = vld [vmem:[#allocation10 + $0x10] sm:$0xff]
    %v578 = vld [vmem:[#allocation10 + $0x18] sm:$0xff]
    %v579 = vld [vmem:[#allocation10 + $0x20] sm:$0xff]
    %v580 = vld [vmem:[#allocation10 + $0x28] sm:$0xff]
    %v581 = vld [vmem:[#allocation10 + $0x30] sm:$0xff]
    %v582 = vld [vmem:[#allocation10 + $0x38] sm:$0xff]
    %v583 = vld [vmem:[#allocation10 + $0x40] sm:$0xff]
    %v584 = vld [vmem:[#allocation10 + $0x48] sm:$0xff]
    %v585 = vld [vmem:[#allocation10 + $0x50] sm:$0xff]
    %v586 = vld [vmem:[#allocation10 + $0x58] sm:$0xff]
    %v587 = vld [vmem:[#allocation10 + $0x60] sm:$0xff]
    %v588 = vld [vmem:[#allocation10 + $0x68] sm:$0xff]
    %v589 = vld [vmem:[#allocation10 + $0x70] sm:$0xff]
    %v590 = vld [vmem:[#allocation10 + $0x78] sm:$0xff]
    %v591 = vld [vmem:[#allocation13] sm:$0xff]
    %v592 = vld [vmem:[#allocation13 + $0x8] sm:$0xff]
    %v593 = vld [vmem:[#allocation13 + $0x10] sm:$0xff]
    %v594 = vld [vmem:[#allocation13 + $0x18] sm:$0xff]
    %v595 = vld [vmem:[#allocation13 + $0x20] sm:$0xff]
    %v596 = vld [vmem:[#allocation13 + $0x28] sm:$0xff]
    %v597 = vld [vmem:[#allocation13 + $0x30] sm:$0xff]
    %v598 = vld [vmem:[#allocation13 + $0x38] sm:$0xff]
    %v599 = vld [vmem:[#allocation13 + $0x40] sm:$0xff]
    %v600 = vld [vmem:[#allocation13 + $0x48] sm:$0xff]
    %v601 = vld [vmem:[#allocation13 + $0x50] sm:$0xff]
    %v602 = vld [vmem:[#allocation13 + $0x58] sm:$0xff]
    %v603 = vld [vmem:[#allocation13 + $0x60] sm:$0xff]
    %v604 = vld [vmem:[#allocation13 + $0x68] sm:$0xff]
    %v605 = vld [vmem:[#allocation13 + $0x70] sm:$0xff]
    %v606 = vld [vmem:[#allocation13 + $0x78] sm:$0xff]
    %607 = vmatpush.msra.mxu0 %v606
    %608 = vmatpush.msra.mxu0 %v605
    %609 = vmatpush.msra.mxu0 %v604
    %610 = vmatpush.msra.mxu0 %v603
    %611 = vmatpush.msra.mxu0 %v602
    %612 = vmatpush.msra.mxu0 %v601
    %613 = vmatpush.msra.mxu0 %v600
    %614 = vmatpush.msra.mxu0 %v599
    %615 = vmatpush.msra.mxu0 %v598
    %616 = vmatpush.msra.mxu0 %v597
    %617 = vmatpush.msra.mxu0 %v596
    %618 = vmatpush.msra.mxu0 %v595
    %619 = vmatpush.msra.mxu0 %v594
    %620 = vmatpush.msra.mxu0 %v593
    %621 = vmatpush.msra.mxu0 %v592
    %622 = vmatpush.msra.mxu0 %v591
    %623 = vmatmul.f32.gmra.mxu0 %v566
    %v624 = vpop.f32.mrf.mxu0
    %v625 = vadd.f32 0.0, %v624
    %626 = vmatmul.f32.gmra.mxu0 %v569
    %v627 = vpop.f32.mrf.mxu0
    %v628 = vadd.f32 0.0, %v627
    %629 = vdwg.mxu0
    %630 = vmatpush.msra.mxu0 %v590
    %631 = vmatpush.msra.mxu0 %v589
    %632 = vmatpush.msra.mxu0 %v588
    %633 = vmatpush.msra.mxu0 %v587
    %634 = vmatpush.msra.mxu0 %v586
    %635 = vmatpush.msra.mxu0 %v585
    %636 = vmatpush.msra.mxu0 %v584
    %637 = vmatpush.msra.mxu0 %v583
    %638 = vmatpush.msra.mxu0 %v582
    %639 = vmatpush.msra.mxu0 %v581
    %640 = vmatpush.msra.mxu0 %v580
    %641 = vmatpush.msra.mxu0 %v579
    %642 = vmatpush.msra.mxu0 %v578
    %643 = vmatpush.msra.mxu0 %v577
    %644 = vmatpush.msra.mxu0 %v576
    %645 = vmatpush.msra.mxu0 %v575
    %646 = vmatmul.f32.gmra.mxu0 %v573
    %v647 = vpop.f32.mrf.mxu0
    %v648 = vadd.f32 %v625, %v647
    %649 = vmatmul.f32.gmra.mxu0 %v574
    %v650 = vpop.f32.mrf.mxu0
    %v651 = vadd.f32 %v628, %v650
    %652 = vdwg.mxu0
    %v653 = vld [vmem:[#allocation11] sm:$0xff]
    %v654 = vld [vmem:[#allocation11 + $0x8] sm:$0xff]
    %v655 = vld [vmem:[#allocation11 + $0x10] sm:$0xff]
    %v656 = vld [vmem:[#allocation11 + $0x18] sm:$0xff]
    %v657 = vld [vmem:[#allocation11 + $0x20] sm:$0xff]
    %v658 = vld [vmem:[#allocation11 + $0x28] sm:$0xff]
    %v659 = vld [vmem:[#allocation11 + $0x30] sm:$0xff]
    %v660 = vld [vmem:[#allocation11 + $0x38] sm:$0xff]
    %v661 = vld [vmem:[#allocation11 + $0x40] sm:$0xff]
    %v662 = vld [vmem:[#allocation11 + $0x48] sm:$0xff]
    %v663 = vld [vmem:[#allocation11 + $0x50] sm:$0xff]
    %v664 = vld [vmem:[#allocation11 + $0x58] sm:$0xff]
    %v665 = vld [vmem:[#allocation11 + $0x60] sm:$0xff]
    %v666 = vld [vmem:[#allocation11 + $0x68] sm:$0xff]
    %v667 = vld [vmem:[#allocation11 + $0x70] sm:$0xff]
    %v668 = vld [vmem:[#allocation11 + $0x78] sm:$0xff]
    %669 = vmatpush.msra.mxu0 %v668
    %670 = vmatpush.msra.mxu0 %v667
    %671 = vmatpush.msra.mxu0 %v666
    %672 = vmatpush.msra.mxu0 %v665
    %673 = vmatpush.msra.mxu0 %v664
    %674 = vmatpush.msra.mxu0 %v663
    %675 = vmatpush.msra.mxu0 %v662
    %676 = vmatpush.msra.mxu0 %v661
    %677 = vmatpush.msra.mxu0 %v660
    %678 = vmatpush.msra.mxu0 %v659
    %679 = vmatpush.msra.mxu0 %v658
    %680 = vmatpush.msra.mxu0 %v657
    %681 = vmatpush.msra.mxu0 %v656
    %682 = vmatpush.msra.mxu0 %v655
    %683 = vmatpush.msra.mxu0 %v654
    %684 = vmatpush.msra.mxu0 %v653
    %685 = vmatmul.f32.gmra.mxu0 %v566
    %v686 = vpop.f32.mrf.mxu0
    %v687 = vadd.f32 0.0, %v686
    %688 = vmatmul.f32.gmra.mxu0 %v569
    %v689 = vpop.f32.mrf.mxu0
    %v690 = vadd.f32 0.0, %v689
    %691 = vdwg.mxu0
    %692 = vmatpush.msra.mxu0 0.0
    %693 = vmatpush.msra.mxu0 0.0
    %694 = vmatpush.msra.mxu0 0.0
    %695 = vmatpush.msra.mxu0 0.0
    %696 = vmatpush.msra.mxu0 0.0
    %697 = vmatpush.msra.mxu0 0.0
    %698 = vmatpush.msra.mxu0 0.0
    %699 = vmatpush.msra.mxu0 0.0
    %700 = vmatpush.msra.mxu0 0.0
    %701 = vmatpush.msra.mxu0 0.0
    %702 = vmatpush.msra.mxu0 0.0
    %703 = vmatpush.msra.mxu0 0.0
    %704 = vmatpush.msra.mxu0 0.0
    %705 = vmatpush.msra.mxu0 0.0
    %706 = vmatpush.msra.mxu0 %v690
    %707 = vmatpush.msra.mxu0 %v687
    %708 = vmatmul.f32.gmra.mxu0 %v376
    %v709 = vpop.f32.mrf.mxu0
    %v710 = vadd.f32 0.0, %v709
    %711 = vmatmul.f32.gmra.mxu0 %v379
    %v712 = vpop.f32.mrf.mxu0
    %v713 = vadd.f32 0.0, %v712
    %714 = vmatmul.f32.gmra.mxu0 %v382
    %v715 = vpop.f32.mrf.mxu0
    %v716 = vadd.f32 0.0, %v715
    %717 = vmatmul.f32.gmra.mxu0 %v385
    %v718 = vpop.f32.mrf.mxu0
    %v719 = vadd.f32 0.0, %v718
    %720 = vmatmul.f32.gmra.mxu0 %v388
    %v721 = vpop.f32.mrf.mxu0
    %v722 = vadd.f32 0.0, %v721
    %723 = vmatmul.f32.gmra.mxu0 %v391
    %v724 = vpop.f32.mrf.mxu0
    %v725 = vadd.f32 0.0, %v724
    %726 = vdwg.mxu0
    %727 = vmatpush.msra.mxu0 0.0
    %728 = vmatpush.msra.mxu0 0.0
    %729 = vmatpush.msra.mxu0 0.0
    %730 = vmatpush.msra.mxu0 0.0
    %731 = vmatpush.msra.mxu0 0.0
    %732 = vmatpush.msra.mxu0 0.0
    %733 = vmatpush.msra.mxu0 0.0
    %734 = vmatpush.msra.mxu0 0.0
    %735 = vmatpush.msra.mxu0 0.0
    %736 = vmatpush.msra.mxu0 0.0
    %737 = vmatpush.msra.mxu0 0.0
    %738 = vmatpush.msra.mxu0 0.0
    %739 = vmatpush.msra.mxu0 0.0
    %740 = vmatpush.msra.mxu0 0.0
    %741 = vmatpush.msra.mxu0 %v651
    %742 = vmatpush.msra.mxu0 %v648
    %743 = vmatmul.f32.gmra.mxu0 %v429
    %v744 = vpop.f32.mrf.mxu0
    %v745 = vadd.f32 %v710, %v744
    %746 = vmatmul.f32.gmra.mxu0 %v432
    %v747 = vpop.f32.mrf.mxu0
    %v748 = vadd.f32 %v713, %v747
    %749 = vmatmul.f32.gmra.mxu0 %v435
    %v750 = vpop.f32.mrf.mxu0
    %v751 = vadd.f32 %v716, %v750
    %752 = vmatmul.f32.gmra.mxu0 %v438
    %v753 = vpop.f32.mrf.mxu0
    %v754 = vadd.f32 %v719, %v753
    %755 = vmatmul.f32.gmra.mxu0 %v441
    %v756 = vpop.f32.mrf.mxu0
    %v757 = vadd.f32 %v722, %v756
    %758 = vmatmul.f32.gmra.mxu0 %v444
    %v759 = vpop.f32.mrf.mxu0
    %v760 = vadd.f32 %v725, %v759
    %761 = vdwg.mxu0
    %v762 = vld [vmem:[%s15] sm:$0x1]
    %v764 = vperm.slane %v762, 0
    %v766 = vadd.f32 %v745, %v764
    %v767 = vadd.f32 %v748, %v764
    %v768 = vadd.f32 %v751, %v764
    %v769 = vadd.f32 %v754, %v764
    %v770 = vadd.f32 %v757, %v764
    %v771 = vadd.f32 %v760, %v764
    %v772 = vtanh.pop %v766
    %v773 = vtanh.pop %v767
    %v774 = vtanh.pop %v768
    %v775 = vtanh.pop %v769
    %v776 = vtanh.pop %v770
    %v777 = vtanh.pop %v771
    %778 = vmatpush.msra.mxu0 0.0
    %779 = vmatpush.msra.mxu0 0.0
    %780 = vmatpush.msra.mxu0 0.0
    %781 = vmatpush.msra.mxu0 0.0
    %782 = vmatpush.msra.mxu0 0.0
    %783 = vmatpush.msra.mxu0 0.0
    %784 = vmatpush.msra.mxu0 0.0
    %785 = vmatpush.msra.mxu0 0.0
    %786 = vmatpush.msra.mxu0 0.0
    %787 = vmatpush.msra.mxu0 0.0
    %788 = vmatpush.msra.mxu0 %v777
    %789 = vmatpush.msra.mxu0 %v776
    %790 = vmatpush.msra.mxu0 %v775
    %791 = vmatpush.msra.mxu0 %v774
    %792 = vmatpush.msra.mxu0 %v773
    %793 = vmatpush.msra.mxu0 %v772
    %794 = vmatmul.f32.gmra.mxu0 %v498
    %v795 = vpop.f32.mrf.mxu0
    %v796 = vadd.f32 0.0, %v795
    %797 = vmatmul.f32.gmra.mxu0 %v501
    %v798 = vpop.f32.mrf.mxu0
    %v799 = vadd.f32 0.0, %v798
    %800 = vdwg.mxu0
    %v801 = vld [vmem:[#allocation14] sm:$0xff]
    %v802 = vld [vmem:[#allocation14 + $0x8] sm:$0xff]
    %v803 = vld [vmem:[#allocation14 + $0x10] sm:$0xff]
    %v804 = vld [vmem:[#allocation14 + $0x18] sm:$0xff]
    %v805 = vld [vmem:[#allocation14 + $0x20] sm:$0xff]
    %v806 = vld [vmem:[#allocation14 + $0x28] sm:$0xff]
    %v807 = vld [vmem:[#allocation14 + $0x30] sm:$0xff]
    %v808 = vld [vmem:[#allocation14 + $0x38] sm:$0xff]
    %v809 = vld [vmem:[#allocation14 + $0x40] sm:$0xff]
    %v810 = vld [vmem:[#allocation14 + $0x48] sm:$0xff]
    %v811 = vld [vmem:[#allocation14 + $0x50] sm:$0xff]
    %v812 = vld [vmem:[#allocation14 + $0x58] sm:$0xff]
    %v813 = vld [vmem:[#allocation14 + $0x60] sm:$0xff]
    %v814 = vld [vmem:[#allocation14 + $0x68] sm:$0xff]
    %v815 = vld [vmem:[#allocation14 + $0x70] sm:$0xff]
    %v816 = vld [vmem:[#allocation14 + $0x78] sm:$0xff]
    %v817 = vld [vmem:[%s17] sm:$0x1]
    %v819 = vperm.slane %v817, 0
    %v821 = vmul.f32 %v237, %v819
    %v822 = vmul.f32 %v240, %v819
    %823 = vmatpush.msra.mxu0 %v816
    %824 = vmatpush.msra.mxu0 %v815
    %825 = vmatpush.msra.mxu0 %v814
    %826 = vmatpush.msra.mxu0 %v813
    %827 = vmatpush.msra.mxu0 %v812
    %828 = vmatpush.msra.mxu0 %v811
    %829 = vmatpush.msra.mxu0 %v810
    %830 = vmatpush.msra.mxu0 %v809
    %831 = vmatpush.msra.mxu0 %v808
    %832 = vmatpush.msra.mxu0 %v807
    %833 = vmatpush.msra.mxu0 %v806
    %834 = vmatpush.msra.mxu0 %v805
    %835 = vmatpush.msra.mxu0 %v804
    %836 = vmatpush.msra.mxu0 %v803
    %837 = vmatpush.msra.mxu0 %v802
    %838 = vmatpush.msra.mxu0 %v801
    %839 = vmatmul.f32.gmra.mxu0 %v796
    %v840 = vpop.f32.mrf.mxu0
    %v841 = vadd.f32 %v821, %v840
    %842 = vmatmul.f32.gmra.mxu0 %v799
    %v843 = vpop.f32.mrf.mxu0
    %v844 = vadd.f32 %v822, %v843
    %845 = vdwg.mxu0
    %846 = vst [vmem:[#allocation20] sm:$0xff] %v841
    %847 = vst [vmem:[#allocation20 + $0x8] sm:$0xff] %v844
    %v848 = vld [vmem:[#allocation16] sm:$0xff]
    %v849 = vld [vmem:[#allocation16 + $0x8] sm:$0xff]
    %v850 = vld [vmem:[#allocation16 + $0x10] sm:$0xff]
    %v851 = vld [vmem:[#allocation16 + $0x18] sm:$0xff]
    %v852 = vld [vmem:[#allocation16 + $0x20] sm:$0xff]
    %v853 = vld [vmem:[#allocation16 + $0x28] sm:$0xff]
    %v854 = vld [vmem:[#allocation16 + $0x30] sm:$0xff]
    %v855 = vld [vmem:[#allocation16 + $0x38] sm:$0xff]
    %v856 = vld [vmem:[#allocation16 + $0x40] sm:$0xff]
    %v857 = vld [vmem:[#allocation16 + $0x48] sm:$0xff]
    %v858 = vld [vmem:[#allocation16 + $0x50] sm:$0xff]
    %v859 = vld [vmem:[#allocation16 + $0x58] sm:$0xff]
    %v860 = vld [vmem:[#allocation16 + $0x60] sm:$0xff]
    %v861 = vld [vmem:[#allocation16 + $0x68] sm:$0xff]
    %v862 = vld [vmem:[#allocation16 + $0x70] sm:$0xff]
    %v863 = vld [vmem:[#allocation16 + $0x78] sm:$0xff]
    %v864 = vld [vmem:[%s19] sm:$0x1]
    %v866 = vperm.slane %v864, 0
    %868 = vmatpush.msra.mxu0 %v863
    %869 = vmatpush.msra.mxu0 %v862
    %870 = vmatpush.msra.mxu0 %v861
    %871 = vmatpush.msra.mxu0 %v860
    %872 = vmatpush.msra.mxu0 %v859
    %873 = vmatpush.msra.mxu0 %v858
    %874 = vmatpush.msra.mxu0 %v857
    %875 = vmatpush.msra.mxu0 %v856
    %876 = vmatpush.msra.mxu0 %v855
    %877 = vmatpush.msra.mxu0 %v854
    %878 = vmatpush.msra.mxu0 %v853
    %879 = vmatpush.msra.mxu0 %v852
    %880 = vmatpush.msra.mxu0 %v851
    %881 = vmatpush.msra.mxu0 %v850
    %882 = vmatpush.msra.mxu0 %v849
    %883 = vmatpush.msra.mxu0 %v848
    %884 = vmatmul.f32.gmra.mxu0 %v841
    %v885 = vpop.f32.mrf.mxu0
    %v886 = vadd.f32 %v866, %v885
    %887 = vmatmul.f32.gmra.mxu0 %v844
    %v888 = vpop.f32.mrf.mxu0
    %v889 = vadd.f32 %v866, %v888
    %890 = vdwg.mxu0
    %v891 = vtanh.pop %v886
    %v892 = vtanh.pop %v889
    %v893 = vld [vmem:[#allocation17] sm:$0xff]
    %v894 = vld [vmem:[#allocation17 + $0x8] sm:$0xff]
    %v895 = vld [vmem:[#allocation17 + $0x10] sm:$0xff]
    %v896 = vld [vmem:[#allocation17 + $0x18] sm:$0xff]
    %v897 = vld [vmem:[#allocation17 + $0x20] sm:$0xff]
    %v898 = vld [vmem:[#allocation17 + $0x28] sm:$0xff]
    %v899 = vld [vmem:[#allocation17 + $0x30] sm:$0xff]
    %v900 = vld [vmem:[#allocation17 + $0x38] sm:$0xff]
    %v901 = vld [vmem:[#allocation17 + $0x40] sm:$0xff]
    %v902 = vld [vmem:[#allocation17 + $0x48] sm:$0xff]
    %v903 = vld [vmem:[#allocation17 + $0x50] sm:$0xff]
    %v904 = vld [vmem:[#allocation17 + $0x58] sm:$0xff]
    %v905 = vld [vmem:[#allocation17 + $0x60] sm:$0xff]
    %v906 = vld [vmem:[#allocation17 + $0x68] sm:$0xff]
    %v907 = vld [vmem:[#allocation17 + $0x70] sm:$0xff]
    %v908 = vld [vmem:[#allocation17 + $0x78] sm:$0xff]
    %v909 = vld [vmem:[%s21] sm:$0x1]
    %v911 = vperm.slane %v909, 0
    %913 = vmatpush.msra.mxu0 %v908
    %914 = vmatpush.msra.mxu0 %v907
    %915 = vmatpush.msra.mxu0 %v906
    %916 = vmatpush.msra.mxu0 %v905
    %917 = vmatpush.msra.mxu0 %v904
    %918 = vmatpush.msra.mxu0 %v903
    %919 = vmatpush.msra.mxu0 %v902
    %920 = vmatpush.msra.mxu0 %v901
    %921 = vmatpush.msra.mxu0 %v900
    %922 = vmatpush.msra.mxu0 %v899
    %923 = vmatpush.msra.mxu0 %v898
    %924 = vmatpush.msra.mxu0 %v897
    %925 = vmatpush.msra.mxu0 %v896
    %926 = vmatpush.msra.mxu0 %v895
    %927 = vmatpush.msra.mxu0 %v894
    %928 = vmatpush.msra.mxu0 %v893
    %929 = vmatmul.f32.gmra.mxu0 %v891
    %v930 = vpop.f32.mrf.mxu0
    %v931 = vadd.f32 %v911, %v930
    %932 = vmatmul.f32.gmra.mxu0 %v892
    %v933 = vpop.f32.mrf.mxu0
    %v934 = vadd.f32 %v911, %v933
    %935 = vdwg.mxu0
    %936 = vst [vmem:[#allocation22] sm:$0xff] %v931
    %937 = vst [vmem:[#allocation22 + $0x8] sm:$0xff] %v934
    // Predicated region
    $region130: #{tpu_custom_call.1} parent=1 // pred_check
      _
    $region131: #{tpu_custom_call.1} parent=1 // pred_check_branch
      %939 = sbr.rel (0) target = $region133
    $region132: #{tpu_custom_call.1} parent=1 // pred_region
      %941 = vsyncadd [#allocation4], 0
      %s942 = sshll.u32 [#allocation19], 4
      %s943 = int_to_ptr.vmem [resolvable:$true] %s942
      %s944 = sshll.u32 %s22, 4
      %s945 = int_to_ptr.hbm [resolvable:$true] %s944
      %950 = dma.vmem_to_hbm [thread:$0]  %s943, 256, %s945, [#allocation4], 128, 128, 8
    $region133: #{tpu_custom_call.1} parent=1 // pred_fallthru
      _
    // Predicated region
    $region134: #{tpu_custom_call.1} parent=1 // pred_check
      _
    $region135: #{tpu_custom_call.1} parent=1 // pred_check_branch
      %952 = sbr.rel (0) target = $region137
    $region136: #{tpu_custom_call.1} parent=1 // pred_region
      %954 = vsyncadd [#allocation21], 0
      %s955 = sshll.u32 [#allocation20], 4
      %s956 = int_to_ptr.vmem [resolvable:$true] %s955
      %s957 = sshll.u32 %s23, 4
      %s958 = int_to_ptr.hbm [resolvable:$true] %s957
      %963 = dma.vmem_to_hbm [thread:$0]  %s956, 256, %s958, [#allocation21], 128, 128, 8
    $region137: #{tpu_custom_call.1} parent=1 // pred_fallthru
      _
    // Predicated region
    $region138: #{tpu_custom_call.1} parent=1 // pred_check
      _
    $region139: #{tpu_custom_call.1} parent=1 // pred_check_branch
      %965 = sbr.rel (0) target = $region141
    $region140: #{tpu_custom_call.1} parent=1 // pred_region
      %967 = vsyncadd [#allocation21], 0
      %s968 = sshll.u32 [#allocation22], 4
      %s969 = int_to_ptr.vmem [resolvable:$true] %s968
      %s970 = sshll.u32 %s24, 4
      %s971 = int_to_ptr.hbm [resolvable:$true] %s970
      %976 = dma.vmem_to_hbm [thread:$0]  %s969, 256, %s971, [#allocation21], 128, 128, 8
    $region141: #{tpu_custom_call.1} parent=1 // pred_fallthru
      _
    // Predicated region
    $region142: #{tpu_custom_call.1} parent=1 // pred_check
      _
    $region143: #{tpu_custom_call.1} parent=1 // pred_check_branch
      %978 = sbr.rel (0) target = $region145
    $region144: #{tpu_custom_call.1} parent=1 // pred_region
      %980 = dma.done [#allocation4], 256
    $region145: #{tpu_custom_call.1} parent=1 // pred_fallthru
      _
    // Predicated region
    $region146: #{tpu_custom_call.1} parent=1 // pred_check
      _
    $region147: #{tpu_custom_call.1} parent=1 // pred_check_branch
      %982 = sbr.rel (0) target = $region149
    $region148: #{tpu_custom_call.1} parent=1 // pred_region
      %984 = dma.done [#allocation21], 256
    $region149: #{tpu_custom_call.1} parent=1 // pred_fallthru
      _
    // Predicated region
    $region150: #{tpu_custom_call.1} parent=1 // pred_check
      _
    $region151: #{tpu_custom_call.1} parent=1 // pred_check_branch
      %986 = sbr.rel (0) target = $region153
    $region152: #{tpu_custom_call.1} parent=1 // pred_region
      %988 = dma.done [#allocation21], 256
    $region153: #{tpu_custom_call.1} parent=1 // pred_fallthru
      _
    %989 = vsyncpa [#allocation3], 1
    %990 = vsyncpa [#allocation6], 1
    %991 = vsyncpa [#allocation9], 1
    %992 = vsyncpa [#allocation12], 1
    %993 = vsyncpa [#allocation15], 1
    %994 = vsyncpa [#allocation18], 1
    %995 = vsyncpa [#allocation4], 1
    %996 = vsyncpa [#allocation21], 1

</llo_original>
